<compile_context>
chip_gen: v7x
topology: tpu7x:2x2x1
jax: 0.10.0
libtpu: 0.0.40
codegen_flags: <defaults>
</compile_context>

<pallas_src>
import math

import jax
import jax.numpy as jnp
from jax.experimental import pallas as pl
from jax.experimental.pallas import tpu as pltpu


N_TRACK = 10
N_WAYPOINTS = 3
IN_FEATURES = N_TRACK * 2 * 2       # 40 (torch Flatten of cat(dim=-1))
HALF_FEATURES = N_TRACK * 2         # 20 (one side, flattened)
HIDDEN = 128
OUT_FEATURES = N_WAYPOINTS * 2      # 6

LANE = 128
MAX_TILE_B = 4096                   # batch columns per grid step
SINGLE_STEP_MAX_B = 1024            # below this a single full-width step is cheapest


def _round_up(x: int, m: int) -> int:
    return ((x + m - 1) // m) * m


def _choose_tile_b(b: int) -> int:
    """Batch-tile (lane-dim) size for the grid."""
    if b <= SINGLE_STEP_MAX_B:
        # One step; a block dim equal to the full array dim is always legal,
        # even when b is not a multiple of 128.
        return b
    # >= 2 roughly-equal, 128-aligned steps: v7x 2-TC sharding via "parallel"
    # semantics plus double-buffered DMA on all gens. Capped so lane-padded
    # VMEM stays inside v5e's 16 MiB scoped default.
    return min(MAX_TILE_B, _round_up(pl.cdiv(b, 2), LANE))


def _mlp_kernel(xT_ref, w1T_ref, b1_ref, w2T_ref, b2_ref, oT_ref):
    """Two-layer MLP on feature-major (transposed) operands.

    xT: (40, tile_b), w1T: (128, 40), b1: (128, 1), w2T: (6, 128), b2: (6, 1)
    h_T = relu(w1T @ xT + b1);  o_T = w2T @ h_T + b2
    """
    h = jnp.dot(w1T_ref[...], xT_ref[...],
                preferred_element_type=jnp.float32)           # (128, tile_b) MXU
    h = jnp.maximum(h + b1_ref[...], 0.0)                     # bias + ReLU on VPU
    o = jnp.dot(w2T_ref[...], h,
                preferred_element_type=jnp.float32) + b2_ref[...]   # (6, tile_b)
    oT_ref[...] = o.astype(oT_ref.dtype)                      # lane-dense store


def prepare_params(params):
    """One-time conversion of torch-ordered params to the kernel layout.

    params['w1'] is the (in=40, out=128) matrix in torch's cat(dim=-1)+Flatten
    feature order: flat feature f = 4*p + c, c in {0,1}=left xy, {2,3}=right xy.
    (When importing real torch Linear weights ((out,in) layout), transpose first.)
    """
    w1 = params["w1"].reshape(N_TRACK, 4, HIDDEN)
    w1_packed = jnp.concatenate(
        [w1[:, 0:2, :].reshape(HALF_FEATURES, HIDDEN),    # rows 0..19  <- left
         w1[:, 2:4, :].reshape(HALF_FEATURES, HIDDEN)],   # rows 20..39 <- right
        axis=0)                                           # (40, 128), packed order
    return {
        "w1T": jnp.asarray(w1_packed.T, jnp.float32),                     # (128, 40)
        "b1T": jnp.asarray(params["b1"].reshape(HIDDEN, 1), jnp.float32),  # (128, 1)
        "w2T": jnp.asarray(params["w2"].T, jnp.float32),                  # (6, 128)
        "b2T": jnp.asarray(params["b2"].reshape(OUT_FEATURES, 1), jnp.float32),  # (6,1)
    }


@jax.jit
def mlp_planner_forward(track_left, track_right, prepared):
    """
    Args:
      track_left:  (b, n_track, 2) float32
      track_right: (b, n_track, 2) float32
      prepared: output of prepare_params()
    Returns:
      (b, n_waypoints, 2) float32
    """
    b = track_left.shape[0]

    # Feature-major relayout; row order matches prepared['w1T'] columns
    # (left flat 0..19, right flat 20..39). Tiny (160 B/sample) and fused by XLA.
    xT = jnp.concatenate(
        [track_left.reshape(b, HALF_FEATURES).T,
         track_right.reshape(b, HALF_FEATURES).T],
        axis=0).astype(jnp.float32)                       # (40, b)

    tile_b = _choose_tile_b(b)
    grid = (pl.cdiv(b, tile_b),)   # ragged last tile: padded read, masked write
                                   # (per-column math, so padding is safe)

    oT = pl.pallas_call(
        _mlp_kernel,
        out_shape=jax.ShapeDtypeStruct((OUT_FEATURES, b), jnp.float32),
        grid=grid,
        in_specs=[
            pl.BlockSpec((IN_FEATURES, tile_b), lambda i: (0, i)),   # x_T tile
            pl.BlockSpec((HIDDEN, IN_FEATURES), lambda i: (0, 0)),   # w1T resident
            pl.BlockSpec((HIDDEN, 1), lambda i: (0, 0)),             # b1 resident
            pl.BlockSpec((OUT_FEATURES, HIDDEN), lambda i: (0, 0)),  # w2T resident
            pl.BlockSpec((OUT_FEATURES, 1), lambda i: (0, 0)),       # b2 resident
        ],
        out_specs=pl.BlockSpec((OUT_FEATURES, tile_b), lambda i: (0, i)),
        compiler_params=pltpu.CompilerParams(
            dimension_semantics=("parallel",),          # megacore / v7x 2-TC sharding
            vmem_limit_bytes=32 * 1024 * 1024,          # headroom; ~4-5 MiB actually used
        ),
    )(xT, prepared["w1T"], prepared["b1T"], prepared["w2T"], prepared["b2T"])

    return oT.T.reshape(b, N_WAYPOINTS, 2)


def init_params(key):
    """Deterministic init mimicking torch.nn.Linear default (uniform +-1/sqrt(fan_in)).

    Stored in (in, out) layout with torch's flat-feature order so the reference
    forward is literally x @ w1 + b1.
    """
    k1, k2, k3, k4 = jax.random.split(key, 4)
    bound1 = 1.0 / math.sqrt(IN_FEATURES)
    bound2 = 1.0 / math.sqrt(HIDDEN)
    return {
        "w1": jax.random.uniform(k1, (IN_FEATURES, HIDDEN), jnp.float32, -bound1, bound1),
        "b1": jax.random.uniform(k2, (1, HIDDEN), jnp.float32, -bound1, bound1),
        "w2": jax.random.uniform(k3, (HIDDEN, OUT_FEATURES), jnp.float32, -bound2, bound2),
        "b2": jax.random.uniform(k4, (1, OUT_FEATURES), jnp.float32, -bound2, bound2),
    }


def _reference_forward(track_left, track_right, params):
    """Pure-JAX reference (matches the torch module exactly)."""
    b = track_left.shape[0]
    x = jnp.concatenate([track_left, track_right], axis=-1).reshape(b, IN_FEATURES)
    h = jnp.maximum(
        jnp.dot(x, params["w1"], precision=jax.lax.Precision.HIGHEST) + params["b1"], 0.0)
    o = jnp.dot(h, params["w2"], precision=jax.lax.Precision.HIGHEST) + params["b2"]
    return o.reshape(b, N_WAYPOINTS, 2)


if __name__ == "__main__":
    key = jax.random.PRNGKey(0)
    kp, kl, kr = jax.random.split(key, 3)

    params = init_params(kp)
    prepared = prepare_params(params)

    # Small sanity case (single grid step, full-array lane block).
    batch = 2
    track_left = jax.random.normal(kl, (batch, N_TRACK, 2), jnp.float32)
    track_right = jax.random.normal(kr, (batch, N_TRACK, 2), jnp.float32)
    out = jax.block_until_ready(mlp_planner_forward(track_left, track_right, prepared))
    ref = _reference_forward(track_left, track_right, params)
    assert out.shape == (batch, N_WAYPOINTS, 2), out.shape
    assert jnp.allclose(out, ref, atol=5e-4, rtol=5e-4), "mismatch vs JAX reference"

    # Multi-step grid + ragged last tile: exercises the >=2-step path (v7x /
    # double-buffering) and lane-masked writeback after the layout change.
    batch2 = 1300
    kl2, kr2 = jax.random.split(kl)
    tl2 = jax.random.normal(kl2, (batch2, N_TRACK, 2), jnp.float32)
    tr2 = jax.random.normal(kr2, (batch2, N_TRACK, 2), jnp.float32)
    out2 = jax.block_until_ready(mlp_planner_forward(tl2, tr2, prepared))
    ref2 = _reference_forward(tl2, tr2, params)
    assert out2.shape == (batch2, N_WAYPOINTS, 2), out2.shape
    assert jnp.allclose(out2, ref2, atol=5e-4, rtol=5e-4), "mismatch on multi-tile batch"

    print("KERNEL_OK")
</pallas_src>

<mosaic_0001>
module attributes {stable_mosaic.version = 11 : i64} {
  func.func @_mlp_kernel(%arg0: i32, %arg1: memref<40x2xf32, #tpu.memory_space<vmem>>, %arg2: memref<128x40xf32, #tpu.memory_space<vmem>>, %arg3: memref<128x1xf32, #tpu.memory_space<vmem>>, %arg4: memref<6x128xf32, #tpu.memory_space<vmem>>, %arg5: memref<6x1xf32, #tpu.memory_space<vmem>>, %arg6: memref<6x2xf32, #tpu.memory_space<vmem>>) attributes {dimension_semantics = [#tpu.dimension_semantics<parallel>], iteration_bounds = array<i64: 1>, scalar_prefetch = 0 : i64, scratch_operands = 0 : i64, tpu.core_type = #tpu.core_type<tc>, window_params = [{transform_indices = @transform_0, window_bounds = array<i64: 40, 2>}, {pipeline_mode = #tpu.pipeline_mode<synchronous>, transform_indices = @transform_1, window_bounds = array<i64: 128, 40>}, {pipeline_mode = #tpu.pipeline_mode<synchronous>, transform_indices = @transform_2, window_bounds = array<i64: 128, 1>}, {pipeline_mode = #tpu.pipeline_mode<synchronous>, transform_indices = @transform_3, window_bounds = array<i64: 6, 128>}, {pipeline_mode = #tpu.pipeline_mode<synchronous>, transform_indices = @transform_4, window_bounds = array<i64: 6, 1>}, {transform_indices = @transform_5, window_bounds = array<i64: 6, 2>}]} {
    %c0 = arith.constant 0 : index
    %c0_0 = arith.constant 0 : index
    %0 = vector.load %arg2[%c0, %c0_0] : memref<128x40xf32, #tpu.memory_space<vmem>>, vector<128x40xf32>
    %c0_1 = arith.constant 0 : index
    %c0_2 = arith.constant 0 : index
    %1 = vector.load %arg1[%c0_1, %c0_2] : memref<40x2xf32, #tpu.memory_space<vmem>>, vector<40x2xf32>
    %cst = arith.constant dense<0.000000e+00> : vector<128x2xf32>
    %2 = tpu.matmul %0, %1, %cst {dimension_numbers = #tpu.dot_dimension_numbers<[1], [0], [0], [1], [0, 0, 1, 1], [], []>} : vector<128x40xf32>, vector<40x2xf32>, vector<128x2xf32> -> vector<128x2xf32>
    %c0_3 = arith.constant 0 : index
    %c0_4 = arith.constant 0 : index
    %3 = vector.load %arg3[%c0_3, %c0_4] : memref<128x1xf32, #tpu.memory_space<vmem>>, vector<128x1xf32>
    %4 = vector.broadcast %3 : vector<128x1xf32> to vector<128x2xf32>
    %5 = arith.addf %2, %4 : vector<128x2xf32>
    %cst_5 = arith.constant 0.000000e+00 : f32
    %6 = vector.broadcast %cst_5 : f32 to vector<128x2xf32>
    %7 = arith.maximumf %5, %6 : vector<128x2xf32>
    %c0_6 = arith.constant 0 : index
    %c0_7 = arith.constant 0 : index
    %8 = vector.load %arg4[%c0_6, %c0_7] : memref<6x128xf32, #tpu.memory_space<vmem>>, vector<6x128xf32>
    %cst_8 = arith.constant dense<0.000000e+00> : vector<6x2xf32>
    %9 = tpu.matmul %8, %7, %cst_8 {dimension_numbers = #tpu.dot_dimension_numbers<[1], [0], [0], [1], [0, 0, 1, 1], [], []>} : vector<6x128xf32>, vector<128x2xf32>, vector<6x2xf32> -> vector<6x2xf32>
    %c0_9 = arith.constant 0 : index
    %c0_10 = arith.constant 0 : index
    %10 = vector.load %arg5[%c0_9, %c0_10] : memref<6x1xf32, #tpu.memory_space<vmem>>, vector<6x1xf32>
    %11 = vector.broadcast %10 : vector<6x1xf32> to vector<6x2xf32>
    %12 = arith.addf %9, %11 : vector<6x2xf32>
    %c0_11 = arith.constant 0 : index
    %c0_12 = arith.constant 0 : index
    %13 = vector.load %arg6[%c0_11, %c0_12] : memref<6x2xf32, #tpu.memory_space<vmem>>, vector<6x2xf32>
    tpu.vector_store %arg6[%c0_11, %c0_12], %12 {strides = array<i32>} : memref<6x2xf32, #tpu.memory_space<vmem>>, vector<6x2xf32>,
    return
  }
  func.func @transform_0(%arg0: i32) -> (i32, i32) {
    %c0_i32 = arith.constant 0 : i32
    %c0_i32_0 = arith.constant 0 : i32
    return %c0_i32, %arg0 : i32, i32
  }
  func.func @transform_1(%arg0: i32) -> (i32, i32) {
    %c0_i32 = arith.constant 0 : i32
    %c0_i32_0 = arith.constant 0 : i32
    %c0_i32_1 = arith.constant 0 : i32
    return %c0_i32, %c0_i32_0 : i32, i32
  }
  func.func @transform_2(%arg0: i32) -> (i32, i32) {
    %c0_i32 = arith.constant 0 : i32
    %c0_i32_0 = arith.constant 0 : i32
    %c0_i32_1 = arith.constant 0 : i32
    return %c0_i32, %c0_i32_0 : i32, i32
  }
  func.func @transform_3(%arg0: i32) -> (i32, i32) {
    %c0_i32 = arith.constant 0 : i32
    %c0_i32_0 = arith.constant 0 : i32
    %c0_i32_1 = arith.constant 0 : i32
    return %c0_i32, %c0_i32_0 : i32, i32
  }
  func.func @transform_4(%arg0: i32) -> (i32, i32) {
    %c0_i32 = arith.constant 0 : i32
    %c0_i32_0 = arith.constant 0 : i32
    %c0_i32_1 = arith.constant 0 : i32
    return %c0_i32, %c0_i32_0 : i32, i32
  }
  func.func @transform_5(%arg0: i32) -> (i32, i32) {
    %c0_i32 = arith.constant 0 : i32
    %c0_i32_0 = arith.constant 0 : i32
    return %c0_i32, %arg0 : i32, i32
  }
}

</mosaic_0001>

<llo_original>
// kernel: mlp_planner_forward.1
$region0: #{mlp_planner_forward.1}
  #allocation0 [shape = 'u32[]', space=smem, size = 0x4, offset = 0x4, fixed_abs, tag = 'smem constant byte address 0x4 - core index']
  #allocation1 [shape = 'u32[144,128]{1,0:T(1,128)}', space=vmem, size = 0x12000, scoped, tag = 'internal scratch']
  %s0 = inlined_call_operand.vmem [shape: f32[40,2], index: 0, kind: input, shape index: {}]
  %s1 = inlined_call_operand.vmem [shape: f32[128,40], index: 1, kind: input, shape index: {}]
  %s2 = inlined_call_operand.vmem [shape: f32[128,1], index: 2, kind: input, shape index: {}]
  %s3 = inlined_call_operand.vmem [shape: f32[6,128], index: 3, kind: input, shape index: {}]
  %s4 = inlined_call_operand.vmem [shape: f32[6,1], index: 4, kind: input, shape index: {}]
  %s5 = inlined_call_operand.vmem [shape: f32[6,2], index: 5, kind: output, shape index: {}]
  %s6 = sld [smem:[#allocation0]]
  $region30: #{mlp_planner_forward.1} parent=0
    _
  %s8 = ssub.s32 1, %s6
  %s9 = scalar_select 0, %s8, %s6
  // Predicated region
  $region2: #{mlp_planner_forward.1} parent=0 // pred_check
    _
  $region3: #{mlp_planner_forward.1} parent=0 // pred_check_branch
    %11 = sbr.rel (0) target = $region5
  $region4: #{mlp_planner_forward.1} parent=0 // pred_region
    _
  $region5: #{mlp_planner_forward.1} parent=0 // pred_fallthru
    _
  // Predicated region
  $region6: #{mlp_planner_forward.1} parent=0 // pred_check
    _
  $region7: #{mlp_planner_forward.1} parent=0 // pred_check_branch
    %13 = sbr.rel (0) target = $region9
  $region8: #{mlp_planner_forward.1} parent=0 // pred_region
    _
  $region9: #{mlp_planner_forward.1} parent=0 // pred_fallthru
    _
  // Predicated region
  $region10: #{mlp_planner_forward.1} parent=0 // pred_check
    _
  $region11: #{mlp_planner_forward.1} parent=0 // pred_check_branch
    %15 = sbr.rel (0) target = $region13
  $region12: #{mlp_planner_forward.1} parent=0 // pred_region
    _
  $region13: #{mlp_planner_forward.1} parent=0 // pred_fallthru
    _
  // Predicated region
  $region14: #{mlp_planner_forward.1} parent=0 // pred_check
    _
  $region15: #{mlp_planner_forward.1} parent=0 // pred_check_branch
    %17 = sbr.rel (0) target = $region17
  $region16: #{mlp_planner_forward.1} parent=0 // pred_region
    _
  $region17: #{mlp_planner_forward.1} parent=0 // pred_fallthru
    _
  // Predicated region
  $region18: #{mlp_planner_forward.1} parent=0 // pred_check
    _
  $region19: #{mlp_planner_forward.1} parent=0 // pred_check_branch
    %19 = sbr.rel (0) target = $region21
  $region20: #{mlp_planner_forward.1} parent=0 // pred_region
    _
  $region21: #{mlp_planner_forward.1} parent=0 // pred_fallthru
    _
  %v20 = vld [vmem:[%s1] sm:$0xff]
  %v21 = vld [vmem:[%s1 + $0x8] sm:$0xff]
  %v22 = vld [vmem:[%s1 + $0x10] sm:$0xff]
  %v23 = vld [vmem:[%s1 + $0x18] sm:$0xff]
  %v24 = vld [vmem:[%s1 + $0x20] sm:$0xff]
  %v25 = vld [vmem:[%s1 + $0x28] sm:$0xff]
  %v26 = vld [vmem:[%s1 + $0x30] sm:$0xff]
  %v27 = vld [vmem:[%s1 + $0x38] sm:$0xff]
  %v28 = vld [vmem:[%s1 + $0x40] sm:$0xff]
  %v29 = vld [vmem:[%s1 + $0x48] sm:$0xff]
  %v30 = vld [vmem:[%s1 + $0x50] sm:$0xff]
  %v31 = vld [vmem:[%s1 + $0x58] sm:$0xff]
  %v32 = vld [vmem:[%s1 + $0x60] sm:$0xff]
  %v33 = vld [vmem:[%s1 + $0x68] sm:$0xff]
  %v34 = vld [vmem:[%s1 + $0x70] sm:$0xff]
  %v35 = vld [vmem:[%s1 + $0x78] sm:$0xff]
  %v36 = vld [vmem:[%s0] sm:$0xff]
  %v37 = vld [vmem:[%s0 + $0x8] sm:$0xff]
  %v38 = vld [vmem:[%s0 + $0x10] sm:$0xff]
  %v39 = vld [vmem:[%s0 + $0x18] sm:$0xff]
  %v40 = vld [vmem:[%s0 + $0x20] sm:$0xff]
  %v41 = vld [vmem:[%s2] sm:$0xff]
  %v42 = vld [vmem:[%s2 + $0x8] sm:$0xff]
  %v43 = vld [vmem:[%s2 + $0x10] sm:$0xff]
  %v44 = vld [vmem:[%s2 + $0x18] sm:$0xff]
  %v45 = vld [vmem:[%s2 + $0x20] sm:$0xff]
  %v46 = vld [vmem:[%s2 + $0x28] sm:$0xff]
  %v47 = vld [vmem:[%s2 + $0x30] sm:$0xff]
  %v48 = vld [vmem:[%s2 + $0x38] sm:$0xff]
  %v49 = vld [vmem:[%s2 + $0x40] sm:$0xff]
  %v50 = vld [vmem:[%s2 + $0x48] sm:$0xff]
  %v51 = vld [vmem:[%s2 + $0x50] sm:$0xff]
  %v52 = vld [vmem:[%s2 + $0x58] sm:$0xff]
  %v53 = vld [vmem:[%s2 + $0x60] sm:$0xff]
  %v54 = vld [vmem:[%s2 + $0x68] sm:$0xff]
  %v55 = vld [vmem:[%s2 + $0x70] sm:$0xff]
  %v56 = vld [vmem:[%s2 + $0x78] sm:$0xff]
  %58 = vset.pattern.permute.xlu0 0
  %59 = vperm.xlu0 %58, %v41
  %v60 = vpop.permute.xlu0 %59
  %63 = vset.pattern.permute.xlu0 0
  %64 = vperm.xlu0 %63, %v42
  %v65 = vpop.permute.xlu0 %64
  %68 = vset.pattern.permute.xlu0 0
  %69 = vperm.xlu0 %68, %v43
  %v70 = vpop.permute.xlu0 %69
  %73 = vset.pattern.permute.xlu0 0
  %74 = vperm.xlu0 %73, %v44
  %v75 = vpop.permute.xlu0 %74
  %78 = vset.pattern.permute.xlu0 0
  %79 = vperm.xlu0 %78, %v45
  %v80 = vpop.permute.xlu0 %79
  %83 = vset.pattern.permute.xlu0 0
  %84 = vperm.xlu0 %83, %v46
  %v85 = vpop.permute.xlu0 %84
  %88 = vset.pattern.permute.xlu0 0
  %89 = vperm.xlu0 %88, %v47
  %v90 = vpop.permute.xlu0 %89
  %93 = vset.pattern.permute.xlu0 0
  %94 = vperm.xlu0 %93, %v48
  %v95 = vpop.permute.xlu0 %94
  %98 = vset.pattern.permute.xlu0 0
  %99 = vperm.xlu0 %98, %v49
  %v100 = vpop.permute.xlu0 %99
  %103 = vset.pattern.permute.xlu0 0
  %104 = vperm.xlu0 %103, %v50
  %v105 = vpop.permute.xlu0 %104
  %108 = vset.pattern.permute.xlu0 0
  %109 = vperm.xlu0 %108, %v51
  %v110 = vpop.permute.xlu0 %109
  %113 = vset.pattern.permute.xlu0 0
  %114 = vperm.xlu0 %113, %v52
  %v115 = vpop.permute.xlu0 %114
  %118 = vset.pattern.permute.xlu0 0
  %119 = vperm.xlu0 %118, %v53
  %v120 = vpop.permute.xlu0 %119
  %123 = vset.pattern.permute.xlu0 0
  %124 = vperm.xlu0 %123, %v54
  %v125 = vpop.permute.xlu0 %124
  %128 = vset.pattern.permute.xlu0 0
  %129 = vperm.xlu0 %128, %v55
  %v130 = vpop.permute.xlu0 %129
  %133 = vset.pattern.permute.xlu0 0
  %134 = vperm.xlu0 %133, %v56
  %v135 = vpop.permute.xlu0 %134
  %vm137 = vcmask 326656
  %v139 = vsel %vm137, %v20, 0
  %v142 = vsel %vm137, %v21, 0
  %v145 = vsel %vm137, %v22, 0
  %v148 = vsel %vm137, %v23, 0
  %v151 = vsel %vm137, %v24, 0
  %v154 = vsel %vm137, %v25, 0
  %v157 = vsel %vm137, %v26, 0
  %v160 = vsel %vm137, %v27, 0
  %v163 = vsel %vm137, %v28, 0
  %v166 = vsel %vm137, %v29, 0
  %v169 = vsel %vm137, %v30, 0
  %v172 = vsel %vm137, %v31, 0
  %v175 = vsel %vm137, %v32, 0
  %v178 = vsel %vm137, %v33, 0
  %v181 = vsel %vm137, %v34, 0
  %v184 = vsel %vm137, %v35, 0
  %186 = vmatprep.subr.mxu0 0.0
  %187 = vmatpush1.msra.mxu0 %v36
  %188 = vmatprep.subr.mxu0 0.0
  %189 = vmatpush1.msra.mxu0 %v37
  %190 = vmatprep.subr.mxu0 0.0
  %191 = vmatpush1.msra.mxu0 %v38
  %192 = vmatprep.subr.mxu0 0.0
  %193 = vmatpush1.msra.mxu0 %v39
  %194 = vmatprep.subr.mxu0 0.0
  %195 = vmatpush1.msra.mxu0 %v40
  %196 = vmatprep.subr.mxu0 0.0
  %197 = vmatpush1.msra.mxu0 0.0
  %198 = vmatprep.subr.mxu0 0.0
  %199 = vmatpush1.msra.mxu0 0.0
  %200 = vmatprep.subr.mxu0 0.0
  %201 = vmatpush1.msra.mxu0 0.0
  %202 = vmatprep.subr.mxu0 0.0
  %203 = vmatpush1.msra.mxu0 0.0
  %204 = vmatprep.subr.mxu0 0.0
  %205 = vmatpush1.msra.mxu0 0.0
  %206 = vmatprep.subr.mxu0 0.0
  %207 = vmatpush1.msra.mxu0 0.0
  %208 = vmatprep.subr.mxu0 0.0
  %209 = vmatpush1.msra.mxu0 0.0
  %210 = vmatprep.subr.mxu0 0.0
  %211 = vmatpush1.msra.mxu0 0.0
  %212 = vmatprep.subr.mxu0 0.0
  %213 = vmatpush1.msra.mxu0 0.0
  %214 = vmatprep.subr.mxu0 0.0
  %215 = vmatpush1.msra.mxu0 0.0
  %216 = vmatprep.subr.mxu0 0.0
  %217 = vmatpush1.msra.mxu0 0.0
  %218 = vmatprep.subr.mxu0 0.0
  %219 = vmatpush1.msra.mxu0 0.0
  %220 = vmatprep.subr.mxu0 0.0
  %221 = vmatpush1.msra.mxu0 0.0
  %222 = vmatprep.subr.mxu0 0.0
  %223 = vmatpush1.msra.mxu0 0.0
  %224 = vmatprep.subr.mxu0 0.0
  %225 = vmatpush1.msra.mxu0 0.0
  %226 = vmatprep.subr.mxu0 0.0
  %227 = vmatpush1.msra.mxu0 0.0
  %228 = vmatprep.subr.mxu0 0.0
  %229 = vmatpush1.msra.mxu0 0.0
  %230 = vmatprep.subr.mxu0 0.0
  %231 = vmatpush1.msra.mxu0 0.0
  %232 = vmatprep.subr.mxu0 0.0
  %233 = vmatpush1.msra.mxu0 0.0
  %234 = vmatprep.subr.mxu0 0.0
  %235 = vmatpush1.msra.mxu0 0.0
  %236 = vmatprep.subr.mxu0 0.0
  %237 = vmatpush1.msra.mxu0 0.0
  %238 = vmatprep.subr.mxu0 0.0
  %239 = vmatpush1.msra.mxu0 0.0
  %240 = vmatprep.subr.mxu0 0.0
  %241 = vmatpush1.msra.mxu0 0.0
  %242 = vmatprep.subr.mxu0 0.0
  %243 = vmatpush1.msra.mxu0 0.0
  %244 = vmatprep.subr.mxu0 0.0
  %245 = vmatpush1.msra.mxu0 0.0
  %246 = vmatprep.subr.mxu0 0.0
  %247 = vmatpush1.msra.mxu0 0.0
  %248 = vmatprep.subr.mxu0 0.0
  %249 = vmatpush1.msra.mxu0 0.0
  %250 = vmatprep.mubr.f32.mxu0 0.0
  %251 = vmatmul.mubr.f32.gmra.mrb[0].mxu0 %v139
  %v252 = vpop.f32.mrb[0].mxu0
  %v253 = vadd.f32 %v60, %v252
  %v254 = vpop.f32.mrb[0].mxu0
  %255 = vmatprep.mubr.f32.mxu0 0.0
  %256 = vmatmul.mubr.f32.gmra.mrb[0].mxu0 %v142
  %v257 = vpop.f32.mrb[0].mxu0
  %v258 = vadd.f32 %v65, %v257
  %v259 = vpop.f32.mrb[0].mxu0
  %260 = vmatprep.mubr.f32.mxu0 0.0
  %261 = vmatmul.mubr.f32.gmra.mrb[0].mxu0 %v145
  %v262 = vpop.f32.mrb[0].mxu0
  %v263 = vadd.f32 %v70, %v262
  %v264 = vpop.f32.mrb[0].mxu0
  %265 = vmatprep.mubr.f32.mxu0 0.0
  %266 = vmatmul.mubr.f32.gmra.mrb[0].mxu0 %v148
  %v267 = vpop.f32.mrb[0].mxu0
  %v268 = vadd.f32 %v75, %v267
  %v269 = vpop.f32.mrb[0].mxu0
  %270 = vmatprep.mubr.f32.mxu0 0.0
  %271 = vmatmul.mubr.f32.gmra.mrb[0].mxu0 %v151
  %v272 = vpop.f32.mrb[0].mxu0
  %v273 = vadd.f32 %v80, %v272
  %v274 = vpop.f32.mrb[0].mxu0
  %275 = vmatprep.mubr.f32.mxu0 0.0
  %276 = vmatmul.mubr.f32.gmra.mrb[0].mxu0 %v154
  %v277 = vpop.f32.mrb[0].mxu0
  %v278 = vadd.f32 %v85, %v277
  %v279 = vpop.f32.mrb[0].mxu0
  %280 = vmatprep.mubr.f32.mxu0 0.0
  %281 = vmatmul.mubr.f32.gmra.mrb[0].mxu0 %v157
  %v282 = vpop.f32.mrb[0].mxu0
  %v283 = vadd.f32 %v90, %v282
  %v284 = vpop.f32.mrb[0].mxu0
  %285 = vmatprep.mubr.f32.mxu0 0.0
  %286 = vmatmul.mubr.f32.gmra.mrb[0].mxu0 %v160
  %v287 = vpop.f32.mrb[0].mxu0
  %v288 = vadd.f32 %v95, %v287
  %v289 = vpop.f32.mrb[0].mxu0
  %290 = vmatprep.mubr.f32.mxu0 0.0
  %291 = vmatmul.mubr.f32.gmra.mrb[0].mxu0 %v163
  %v292 = vpop.f32.mrb[0].mxu0
  %v293 = vadd.f32 %v100, %v292
  %v294 = vpop.f32.mrb[0].mxu0
  %295 = vmatprep.mubr.f32.mxu0 0.0
  %296 = vmatmul.mubr.f32.gmra.mrb[0].mxu0 %v166
  %v297 = vpop.f32.mrb[0].mxu0
  %v298 = vadd.f32 %v105, %v297
  %v299 = vpop.f32.mrb[0].mxu0
  %300 = vmatprep.mubr.f32.mxu0 0.0
  %301 = vmatmul.mubr.f32.gmra.mrb[0].mxu0 %v169
  %v302 = vpop.f32.mrb[0].mxu0
  %v303 = vadd.f32 %v110, %v302
  %v304 = vpop.f32.mrb[0].mxu0
  %305 = vmatprep.mubr.f32.mxu0 0.0
  %306 = vmatmul.mubr.f32.gmra.mrb[0].mxu0 %v172
  %v307 = vpop.f32.mrb[0].mxu0
  %v308 = vadd.f32 %v115, %v307
  %v309 = vpop.f32.mrb[0].mxu0
  %310 = vmatprep.mubr.f32.mxu0 0.0
  %311 = vmatmul.mubr.f32.gmra.mrb[0].mxu0 %v175
  %v312 = vpop.f32.mrb[0].mxu0
  %v313 = vadd.f32 %v120, %v312
  %v314 = vpop.f32.mrb[0].mxu0
  %315 = vmatprep.mubr.f32.mxu0 0.0
  %316 = vmatmul.mubr.f32.gmra.mrb[0].mxu0 %v178
  %v317 = vpop.f32.mrb[0].mxu0
  %v318 = vadd.f32 %v125, %v317
  %v319 = vpop.f32.mrb[0].mxu0
  %320 = vmatprep.mubr.f32.mxu0 0.0
  %321 = vmatmul.mubr.f32.gmra.mrb[0].mxu0 %v181
  %v322 = vpop.f32.mrb[0].mxu0
  %v323 = vadd.f32 %v130, %v322
  %v324 = vpop.f32.mrb[0].mxu0
  %325 = vmatprep.mubr.f32.mxu0 0.0
  %326 = vmatmul.mubr.f32.gmra.mrb[0].mxu0 %v184
  %v327 = vpop.f32.mrb[0].mxu0
  %v328 = vadd.f32 %v135, %v327
  %v329 = vpop.f32.mrb[0].mxu0
  %330 = vdwg.mxu0
  %v331 = vmax.f32 %v253, 0.0
  %v332 = vmax.f32 %v258, 0.0
  %v333 = vmax.f32 %v263, 0.0
  %v334 = vmax.f32 %v268, 0.0
  %v335 = vmax.f32 %v273, 0.0
  %v336 = vmax.f32 %v278, 0.0
  %v337 = vmax.f32 %v283, 0.0
  %v338 = vmax.f32 %v288, 0.0
  %v339 = vmax.f32 %v293, 0.0
  %v340 = vmax.f32 %v298, 0.0
  %v341 = vmax.f32 %v303, 0.0
  %v342 = vmax.f32 %v308, 0.0
  %v343 = vmax.f32 %v313, 0.0
  %v344 = vmax.f32 %v318, 0.0
  %v345 = vmax.f32 %v323, 0.0
  %v346 = vmax.f32 %v328, 0.0
  %v347 = vld [vmem:[%s3] sm:$0x3f]
  %v348 = vld [vmem:[%s4] sm:$0x3f]
  %350 = vset.pattern.permute.xlu0 0
  %351 = vperm.xlu0 %350, %v348
  %v352 = vpop.permute.xlu0 %351
  %354 = vmatprep.subr.mxu0 0.0
  %355 = vmatpush1.msra.mxu0 %v331
  %356 = vmatprep.subr.mxu0 0.0
  %357 = vmatpush1.msra.mxu0 %v332
  %358 = vmatprep.subr.mxu0 0.0
  %359 = vmatpush1.msra.mxu0 %v333
  %360 = vmatprep.subr.mxu0 0.0
  %361 = vmatpush1.msra.mxu0 %v334
  %362 = vmatprep.subr.mxu0 0.0
  %363 = vmatpush1.msra.mxu0 %v335
  %364 = vmatprep.subr.mxu0 0.0
  %365 = vmatpush1.msra.mxu0 %v336
  %366 = vmatprep.subr.mxu0 0.0
  %367 = vmatpush1.msra.mxu0 %v337
  %368 = vmatprep.subr.mxu0 0.0
  %369 = vmatpush1.msra.mxu0 %v338
  %370 = vmatprep.subr.mxu0 0.0
  %371 = vmatpush1.msra.mxu0 %v339
  %372 = vmatprep.subr.mxu0 0.0
  %373 = vmatpush1.msra.mxu0 %v340
  %374 = vmatprep.subr.mxu0 0.0
  %375 = vmatpush1.msra.mxu0 %v341
  %376 = vmatprep.subr.mxu0 0.0
  %377 = vmatpush1.msra.mxu0 %v342
  %378 = vmatprep.subr.mxu0 0.0
  %379 = vmatpush1.msra.mxu0 %v343
  %380 = vmatprep.subr.mxu0 0.0
  %381 = vmatpush1.msra.mxu0 %v344
  %382 = vmatprep.subr.mxu0 0.0
  %383 = vmatpush1.msra.mxu0 %v345
  %384 = vmatprep.subr.mxu0 0.0
  %385 = vmatpush1.msra.mxu0 %v346
  %386 = vmatprep.subr.mxu0 0.0
  %387 = vmatpush1.msra.mxu0 0.0
  %388 = vmatprep.subr.mxu0 0.0
  %389 = vmatpush1.msra.mxu0 0.0
  %390 = vmatprep.subr.mxu0 0.0
  %391 = vmatpush1.msra.mxu0 0.0
  %392 = vmatprep.subr.mxu0 0.0
  %393 = vmatpush1.msra.mxu0 0.0
  %394 = vmatprep.subr.mxu0 0.0
  %395 = vmatpush1.msra.mxu0 0.0
  %396 = vmatprep.subr.mxu0 0.0
  %397 = vmatpush1.msra.mxu0 0.0
  %398 = vmatprep.subr.mxu0 0.0
  %399 = vmatpush1.msra.mxu0 0.0
  %400 = vmatprep.subr.mxu0 0.0
  %401 = vmatpush1.msra.mxu0 0.0
  %402 = vmatprep.subr.mxu0 0.0
  %403 = vmatpush1.msra.mxu0 0.0
  %404 = vmatprep.subr.mxu0 0.0
  %405 = vmatpush1.msra.mxu0 0.0
  %406 = vmatprep.subr.mxu0 0.0
  %407 = vmatpush1.msra.mxu0 0.0
  %408 = vmatprep.subr.mxu0 0.0
  %409 = vmatpush1.msra.mxu0 0.0
  %410 = vmatprep.subr.mxu0 0.0
  %411 = vmatpush1.msra.mxu0 0.0
  %412 = vmatprep.subr.mxu0 0.0
  %413 = vmatpush1.msra.mxu0 0.0
  %414 = vmatprep.subr.mxu0 0.0
  %415 = vmatpush1.msra.mxu0 0.0
  %416 = vmatprep.subr.mxu0 0.0
  %417 = vmatpush1.msra.mxu0 0.0
  %418 = vmatprep.mubr.f32.mxu0 0.0
  %419 = vmatmul.mubr.f32.gmra.mrb[0].mxu0 %v347
  %v420 = vpop.f32.mrb[0].mxu0
  %v421 = vadd.f32 %v352, %v420
  %v422 = vpop.f32.mrb[0].mxu0
  %423 = vdwg.mxu0
  %vm424 = vcmask 13312
  %425 = vst.msk [vmem:[%s5] sm:$0x3f] %vm424, %v421
  // Predicated region
  $region22: #{mlp_planner_forward.1} parent=0 // pred_check
    _
  $region23: #{mlp_planner_forward.1} parent=0 // pred_check_branch
    %427 = sbr.rel (0) target = $region25
  $region24: #{mlp_planner_forward.1} parent=0 // pred_region
    _
  $region25: #{mlp_planner_forward.1} parent=0 // pred_fallthru
    _
  // Predicated region
  $region26: #{mlp_planner_forward.1} parent=0 // pred_check
    _
  $region27: #{mlp_planner_forward.1} parent=0 // pred_check_branch
    %429 = sbr.rel (0) target = $region29
  $region28: #{mlp_planner_forward.1} parent=0 // pred_region
    _
  $region29: #{mlp_planner_forward.1} parent=0 // pred_fallthru
    _

</llo_original>
